<compile_context>
chip_gen: v6e
topology: v6e:2x2x1
jax: 0.10.0
libtpu: 0.0.40
codegen_flags: <defaults>
</compile_context>

<pallas_src>
import functools

import jax
import jax.numpy as jnp
from jax import lax
from jax.experimental import pallas as pl
from jax.experimental.pallas import tpu as pltpu


# ---------------------------------------------------------------------------
# Tiny probe: detect pltpu.roll's shift convention once, so the fused kernel
# is correct regardless of the backend's rotate direction convention.
# ---------------------------------------------------------------------------
def _roll_probe_kernel(x_ref, o_ref):
    o_ref[...] = pltpu.roll(x_ref[...], shift=127, axis=1)


@functools.lru_cache(maxsize=1)
def _roll_matches_numpy():
    x = jnp.arange(8 * 128, dtype=jnp.float32).reshape(8, 128)
    out = pl.pallas_call(
        _roll_probe_kernel,
        out_shape=jax.ShapeDtypeStruct((8, 128), jnp.float32),
    )(x)
    return bool(jnp.array_equal(out, jnp.roll(x, 127, axis=1)))


# ---------------------------------------------------------------------------
# Fused 'same' Conv2d kernel: one batch image per grid step.
# ---------------------------------------------------------------------------
def _fused_conv2d_kernel(x_ref, w_ref, b_ref, m_ref, o_ref, *, ksize, pad,
                         width, hw, padlen, roll_is_numpy):
    """Refs (all VMEM):
       x_ref : (C, PADLEN)     flattened zero-padded input (lanes = spatial)
       w_ref : (k*k*C, OC, 1)  weights, tap-major (i, j, c)
       b_ref : (OC, 1)         bias
       m_ref : (k, 1, H*W)     multiplicative W-boundary masks per tap column j
       o_ref : (OC, H*W)       lane-dense output slab for this image
    """
    n_ch = x_ref.shape[0]
    oc = o_ref.shape[0]

    x_all = x_ref[...]                                   # (C, PADLEN), one load
    acc = jnp.zeros((oc, hw), dtype=jnp.float32)

    for i in range(ksize):
        for j in range(ksize):
            off = i * width + j                          # flat shift of this tap
            if off == 0:
                rolled = x_all
            else:
                shift = (padlen - off) if roll_is_numpy else off
                rolled = pltpu.roll(x_all, shift=shift, axis=1)
            tap = rolled[:, :hw]                         # (C, H*W), aligned slice
            if j != pad:                                 # zero out-of-image cols
                tap = tap * m_ref[j]
            for c in range(n_ch):
                t = (i * ksize + j) * n_ch + c
                # (OC, 1) * (1, H*W) broadcast FMA on the VPU.
                acc = acc + w_ref[t] * tap[c:c + 1, :]

    o_ref[...] = (acc + b_ref[...]).astype(o_ref.dtype)


@functools.partial(jax.jit, static_argnames=("ksize", "pad", "roll_is_numpy"))
def _expand_output_conv2d_forward(x, weight, bias, *, ksize, pad, roll_is_numpy):
    N, C, H, W = x.shape
    OC = weight.shape[0]
    HW = H * W

    # Flat-layout geometry: pad H by `pad`, flatten (H+2p, W) row-major, then
    # front-pad by `pad` so tap (i, j) of output pixel q reads flat[q + i*W + j].
    base = pad + (H + 2 * pad) * W
    needed = HW + (ksize - 1) * (W + 1)
    padlen = ((max(base, needed) + 127) // 128) * 128    # whole vregs on lanes

    xh = jnp.pad(x, ((0, 0), (0, 0), (pad, pad), (0, 0)))        # pad H only
    xf = jnp.pad(xh.reshape(N, C, (H + 2 * pad) * W),
                 ((0, 0), (0, 0), (pad, padlen - base)))         # (N, C, PADLEN)

    # Weights tap-major: w_r[(i*k + j)*C + c, oc, 0] = weight[oc, c, i, j].
    w_r = jnp.transpose(weight, (2, 3, 1, 0)).reshape(ksize * ksize * C, OC)
    w_r = w_r[:, :, None]                                        # (k*k*C, OC, 1)
    b_r = bias.reshape(OC, 1)

    # Per-j column masks: output column x is valid iff 0 <= x + j - pad < W.
    col = jnp.arange(W)
    masks = jnp.stack(
        [((col + (j - pad) >= 0) & (col + (j - pad) < W)).astype(x.dtype)
         for j in range(ksize)], axis=0)                         # (k, W)
    masks = jnp.tile(masks, (1, H)).reshape(ksize, 1, HW)        # (k, 1, H*W)

    kernel = functools.partial(
        _fused_conv2d_kernel, ksize=ksize, pad=pad, width=W, hw=HW,
        padlen=padlen, roll_is_numpy=roll_is_numpy)

    out2d = pl.pallas_call(
        kernel,
        out_shape=jax.ShapeDtypeStruct((N * OC, HW), x.dtype),
        grid_spec=pltpu.PrefetchScalarGridSpec(
            num_scalar_prefetch=0,
            grid=(N,),
            in_specs=[
                pl.BlockSpec((None, C, padlen), lambda n: (n, 0, 0)),      # x
                pl.BlockSpec((ksize * ksize * C, OC, 1), lambda n: (0, 0, 0)),
                pl.BlockSpec((OC, 1), lambda n: (0, 0)),                   # bias
                pl.BlockSpec((ksize, 1, HW), lambda n: (0, 0, 0)),         # masks
            ],
            out_specs=pl.BlockSpec((OC, HW), lambda n: (n, 0)),
        ),
        compiler_params=pltpu.CompilerParams(
            dimension_semantics=("parallel",),
        ),
    )(xf, w_r, b_r, masks)

    # (N*OC, H*W) -> (N, OC, H, W): a pure view reshape, no transpose.
    return out2d.reshape(N, OC, H, W)


class ExpandOutputConv2d:
    """JAX/Pallas equivalent of `_ExpandOutputConvNd` with a Conv2d base layer.

    forward(x) == Conv2d(in_channels, num_params*event_dim, k, padding=k//2)(x)
    """

    def __init__(self, in_channels, event_dim, num_params, kernel_size=3, key=None):
        if kernel_size % 2 != 1:
            raise ValueError("only odd kernel sizes match PyTorch 'same' padding")
        self.event_dim = event_dim
        self.num_params = num_params
        self.out_channels = num_params * event_dim
        self.in_channels = in_channels
        self.kernel_size = kernel_size
        self.padding = kernel_size // 2

        if key is None:
            key = jax.random.PRNGKey(0)
        kw_key, kb_key = jax.random.split(key)
        fan_in = in_channels * kernel_size * kernel_size
        bound = 1.0 / (fan_in ** 0.5)
        # Deterministic init matching PyTorch Conv2d's kaiming-uniform ranges.
        self.weight = jax.random.uniform(
            kw_key, (self.out_channels, in_channels, kernel_size, kernel_size),
            dtype=jnp.float32, minval=-bound, maxval=bound)
        self.bias = jax.random.uniform(
            kb_key, (self.out_channels,), dtype=jnp.float32,
            minval=-bound, maxval=bound)
        self._roll_is_numpy = _roll_matches_numpy()

    def __call__(self, x):
        return _expand_output_conv2d_forward(
            x, self.weight, self.bias,
            ksize=self.kernel_size, pad=self.padding,
            roll_is_numpy=self._roll_is_numpy)


if __name__ == "__main__":
    key = jax.random.PRNGKey(0)
    xkey, pkey = jax.random.split(key)

    # Shapes consistent with the module: batch=2, in_channels=4, spatial=16x16,
    # num_params=2 (loc, scale), event_dim=4 -> out_channels=8.
    N, C, H, W = 2, 4, 16, 16
    x = jax.random.normal(xkey, (N, C, H, W), dtype=jnp.float32)

    layer = ExpandOutputConv2d(in_channels=C, event_dim=4, num_params=2,
                               kernel_size=3, key=pkey)
    out = jax.block_until_ready(layer(x))

    # Reference: XLA conv with the same NCHW / OIHW conventions as PyTorch.
    ref = lax.conv_general_dilated(
        x, layer.weight, window_strides=(1, 1), padding="SAME",
        dimension_numbers=("NCHW", "OIHW", "NCHW"),
    ) + layer.bias.reshape(1, -1, 1, 1)

    assert out.shape == (N, layer.out_channels, H, W)
    assert jnp.allclose(out, ref, atol=1e-4, rtol=1e-4)
    print("KERNEL_OK")
</pallas_src>

<mosaic_0001>
module attributes {stable_mosaic.version = 11 : i64} {
  func.func @_roll_probe_kernel(%arg0: memref<8x128xf32, #tpu.memory_space<vmem>>, %arg1: memref<8x128xf32, #tpu.memory_space<vmem>>) attributes {dimension_semantics = [], scalar_prefetch = 0 : i64, scratch_operands = 0 : i64, tpu.core_type = #tpu.core_type<tc>} {
    %c0 = arith.constant 0 : index
    %c0_0 = arith.constant 0 : index
    %0 = vector.load %arg0[%c0, %c0_0] : memref<8x128xf32, #tpu.memory_space<vmem>>, vector<8x128xf32>
    %c127_i32 = arith.constant 127 : i32
    %1 = tpu.dynamic_rotate %0 by %c127_i32 dim 1 : vector<8x128xf32>, i32 -> vector<8x128xf32>
    %c0_1 = arith.constant 0 : index
    %c0_2 = arith.constant 0 : index
    %2 = vector.load %arg1[%c0_1, %c0_2] : memref<8x128xf32, #tpu.memory_space<vmem>>, vector<8x128xf32>
    tpu.vector_store %arg1[%c0_1, %c0_2], %1 {strides = array<i32>} : memref<8x128xf32, #tpu.memory_space<vmem>>, vector<8x128xf32>,
    return
  }
}

</mosaic_0001>

<llo_original>
// kernel: tpu_custom_call.1
$region0: #{tpu_custom_call.1}
  #allocation0 [shape = 'u32[]', space=smem, size = 0x4, offset = 0x4, fixed_abs, tag = 'smem constant byte address 0x4 - core index']
  #allocation1 [shape = 'u32[144,128]{1,0:T(1,128)}', space=vmem, size = 0x12000, scoped, tag = 'internal scratch']
  %s0 = inlined_call_operand.hbm [shape: f32[8,128], index: 0, kind: input, shape index: {}]
  %s1 = inlined_call_operand.hbm [shape: f32[8,128], index: 1, kind: output, shape index: {}]
  %s2 = sld [smem:[#allocation0]]
  $region18: #{tpu_custom_call.1} parent=0
    _
  %s4 = ssub.s32 1, %s2
  %s5 = scalar_select 0, %s4, %s2
  $region1: #{tpu_custom_call.1} parent=0
    #allocation2 [shape = 'u8[4096]{0}', space=vmem, size = 0x1000, scoped, tag = 'input window, operand 0, single buffered']
    #allocation3 [shape = 's32[1]{0}', space=sflag, size = 0x4, scoped, tag = 'scoped memory for tpu_custom_call.1']
    #allocation4 [shape = 's32[1]{0}', space=sflag, size = 0x4, scoped, tag = 'scoped memory for tpu_custom_call.1']
    #allocation5 [shape = 'u8[4096]{0}', space=vmem, size = 0x1000, scoped, tag = 'output window, operand 0, single buffered']
    %6 = vsyncpa [#allocation3], 0
    %7 = vsyncpa [#allocation4], 0
    // Predicated region
    $region2: #{tpu_custom_call.1} parent=1 // pred_check
      _
    $region3: #{tpu_custom_call.1} parent=1 // pred_check_branch
      %9 = sbr.rel (0) target = $region5
    $region4: #{tpu_custom_call.1} parent=1 // pred_region
      %s11 = ssub.s32 128, 128
      %12 = vsyncadd [#allocation3], %s11
      %s14 = sshll.u32 [#allocation2], 4
      %s15 = int_to_ptr.vmem [resolvable:$true] %s14
      %17 = dma.hbm_to_vmem [thread:$0]  %s0, 128, %s15, [#allocation3]
    $region5: #{tpu_custom_call.1} parent=1 // pred_fallthru
      _
    // Predicated region
    $region6: #{tpu_custom_call.1} parent=1 // pred_check
      _
    $region7: #{tpu_custom_call.1} parent=1 // pred_check_branch
      %19 = sbr.rel (0) target = $region9
    $region8: #{tpu_custom_call.1} parent=1 // pred_region
      %20 = dma.done [#allocation3], 128
    $region9: #{tpu_custom_call.1} parent=1 // pred_fallthru
      _
    %v21 = vld [vmem:[#allocation2] sm:$0xff]
    %22 = vrot.lane.b32.xlu0 %v21, 127
    %v23 = vpop.permute.xlu0 %22
    %24 = vst [vmem:[#allocation5] sm:$0xff] %v23
    // Predicated region
    $region10: #{tpu_custom_call.1} parent=1 // pred_check
      _
    $region11: #{tpu_custom_call.1} parent=1 // pred_check_branch
      %26 = sbr.rel (0) target = $region13
    $region12: #{tpu_custom_call.1} parent=1 // pred_region
      %s28 = ssub.s32 128, 128
      %29 = vsyncadd [#allocation4], %s28
      %s31 = sshll.u32 [#allocation5], 4
      %s32 = int_to_ptr.vmem [resolvable:$true] %s31
      %34 = dma.vmem_to_hbm [thread:$0]  %s32, 128, %s1, [#allocation4]
    $region13: #{tpu_custom_call.1} parent=1 // pred_fallthru
      _
    // Predicated region
    $region14: #{tpu_custom_call.1} parent=1 // pred_check
      _
    $region15: #{tpu_custom_call.1} parent=1 // pred_check_branch
      %36 = sbr.rel (0) target = $region17
    $region16: #{tpu_custom_call.1} parent=1 // pred_region
      %37 = dma.done [#allocation4], 128
    $region17: #{tpu_custom_call.1} parent=1 // pred_fallthru
      _
    %38 = vsyncpa [#allocation3], 1
    %39 = vsyncpa [#allocation4], 1

</llo_original>
